<compile_context>
chip_gen: v7x
topology: tpu7x:2x2x1
jax: 0.10.0
libtpu: 0.0.40
codegen_flags: <defaults>
</compile_context>

<pallas_src>
import functools

import jax
import jax.numpy as jnp
from jax.experimental import pallas as pl
from jax.experimental.pallas import tpu as pltpu

ELU_ALPHA = 1.0
BN_EPS = 1e-5
KH, KW, SH = 3, 2, 2


def _conv_stats_kernel(xe_ref, xo_ref, w_ref, mask_ref,
                       y_ref, s1_ref, s2_ref, *, t1):
    """Phase 1: fused im2col + conv (MXU) + per-block BN partial stats.

    xe_ref  : [1, C_in, L]      even freq rows of padded x, (row, T+1) flattened
    xo_ref  : [1, C_in, L]      odd  freq rows, same flattening
    w_ref   : [6, C_out, C_in]  conv weights per tap (kh*KW + kw)
    mask_ref: [1, Np] f32       1.0 on real pixels, 0.0 on the junk col per row
    y_ref   : [1, C_out, Np]    pre-BN conv output (lane dim = flattened pixels)
    s1_ref  : [1, C_out, 1]     sum(y)   over real pixels of this block
    s2_ref  : [1, C_out, 1]     sum(y*y) over real pixels of this block
    """
    npix = y_ref.shape[-1]
    c_out = y_ref.shape[1]

    xe = xe_ref[0].astype(jnp.float32)          # [C_in, L]
    xo = xo_ref[0].astype(jnp.float32)          # [C_in, L]

    # Pixel n = fo*(T+1) + t reads x_pad[2*fo + kh, t + kw]; with the even/odd
    # row split each tap is a contiguous lane slice:
    taps = (
        xe[:, 0:npix],                   # kh=0, kw=0
        xe[:, 1:npix + 1],               # kh=0, kw=1
        xo[:, 0:npix],                   # kh=1, kw=0
        xo[:, 1:npix + 1],               # kh=1, kw=1
        xe[:, t1:t1 + npix],             # kh=2, kw=0
        xe[:, t1 + 1:t1 + 1 + npix],     # kh=2, kw=1
    )

    y = jnp.zeros((c_out, npix), jnp.float32)
    for k in range(KH * KW):
        y = y + jnp.dot(w_ref[k].astype(jnp.float32), taps[k],
                        preferred_element_type=jnp.float32)
    # NOTE: conv bias intentionally omitted -- it only shifts the per-channel
    # mean and is exactly cancelled by training-mode BatchNorm.

    y_ref[0] = y.astype(y_ref.dtype)

    m = mask_ref[...]                                    # [1, Np]
    ym = y * m
    s1_ref[0] = jnp.sum(ym, axis=1, keepdims=True)       # [C_out, 1]
    s2_ref[0] = jnp.sum(ym * y, axis=1, keepdims=True)   # sum(mask * y^2)


def _bn_elu_kernel(y_ref, scale_ref, shift_ref, o_ref):
    """Phase 2: folded BN (y*scale + shift) + ELU; drops the per-row junk col."""
    t_out = o_ref.shape[-1]
    y = y_ref[0].astype(jnp.float32)              # [C_out, F_out, T+1]
    z = y * scale_ref[...] + shift_ref[...]       # [C_out, 1, 1] broadcasts
    z = jnp.where(z > 0.0, z,
                  ELU_ALPHA * (jnp.exp(jnp.minimum(z, 0.0)) - 1.0))
    o_ref[0] = z[:, :, :t_out]


def non_causal_conv_block(x, conv_w, conv_b, bn_gamma, bn_beta,
                          *, storage_dtype=jnp.float32):
    """
    x       : [B, C_in, F, T]   (NCHW, like PyTorch)
    conv_w  : [C_out, C_in, 3, 2]
    conv_b  : [C_out]           (unused: exactly cancelled by training-mode BN)
    bn_gamma: [C_out]
    bn_beta : [C_out]
    returns : [B, C_out, F_out, T],  F_out = (F - 3)//2 + 1

    storage_dtype: dtype of the rearranged activations / conv intermediate in
    HBM (jnp.bfloat16 halves DMA bytes on v6e/v7x; all math stays float32).
    """
    del conv_b  # exactly cancelled by training-mode BatchNorm
    B, C_in, F, T = x.shape
    C_out = conv_w.shape[0]
    F_out = (F - KH) // SH + 1
    T1 = T + 1                    # T left-padded by 1 (p=(0,1), then drop last col)
    R = F_out + 2                 # rows kept per parity (+ slack for the kh=2 taps)
    Np = F_out * T1               # flattened (fo, t') pixels incl. 1 junk col / row
    L = R * T1

    # --- light layout prep (no im2col blow-up: ~same byte volume as x) -------
    x32 = x.astype(jnp.float32)
    x_pad = jnp.pad(x32, ((0, 0), (0, 0), (0, 2 * R - F), (1, 0)))  # [B,C,2R,T1]
    xe = x_pad[:, :, 0::2, :].reshape(B, C_in, L).astype(storage_dtype)
    xo = x_pad[:, :, 1::2, :].reshape(B, C_in, L).astype(storage_dtype)

    # weights per tap: index (kh*KW + kw, co, ci)
    w_taps = jnp.transpose(conv_w.astype(jnp.float32), (2, 3, 0, 1))
    w_taps = w_taps.reshape(KH * KW, C_out, C_in)

    # 1.0 on real pixels, 0.0 on the junk column t' == T of each fo row.
    mask = ((jnp.arange(Np, dtype=jnp.int32) % T1) < T)
    mask = mask.astype(jnp.float32).reshape(1, Np)

    cparams = pltpu.CompilerParams(
        dimension_semantics=("parallel",),
        # re-derived for v7x's 64 MiB VMEM; per-batch blocks here are small.
        vmem_limit_bytes=32 * 1024 * 1024,
    )

    # --- phase 1: fused-im2col conv (MXU) + per-batch BN partial stats -------
    # TODO(synk): for very long T (or B == 1) add a pixel-tile grid axis with a
    # (T+2)-lane halo so VMEM stays bounded and pipelining survives.
    y_flat, psum, psq = pl.pallas_call(
        functools.partial(_conv_stats_kernel, t1=T1),
        out_shape=(
            jax.ShapeDtypeStruct((B, C_out, Np), storage_dtype),
            jax.ShapeDtypeStruct((B, C_out, 1), jnp.float32),
            jax.ShapeDtypeStruct((B, C_out, 1), jnp.float32),
        ),
        grid=(B,),
        in_specs=[
            pl.BlockSpec((1, C_in, L), lambda b: (b, 0, 0)),
            pl.BlockSpec((1, C_in, L), lambda b: (b, 0, 0)),
            pl.BlockSpec((KH * KW, C_out, C_in), lambda b: (0, 0, 0)),
            pl.BlockSpec((1, Np), lambda b: (0, 0)),
        ],
        out_specs=(
            pl.BlockSpec((1, C_out, Np), lambda b: (b, 0, 0)),
            pl.BlockSpec((1, C_out, 1), lambda b: (b, 0, 0)),
            pl.BlockSpec((1, C_out, 1), lambda b: (b, 0, 0)),
        ),
        compiler_params=cparams,
    )(xe, xo, w_taps, mask)

    # --- tiny cross-batch reduction + BN folding (plain JAX, [C_out]-sized) --
    cnt = jnp.asarray(B * F_out * T, jnp.float32)
    mean = jnp.sum(psum[:, :, 0], axis=0) / cnt
    ex2 = jnp.sum(psq[:, :, 0], axis=0) / cnt
    var = jnp.maximum(ex2 - mean * mean, 0.0)   # guard E[y^2]-mean^2 cancellation
    scale = bn_gamma.astype(jnp.float32) * jax.lax.rsqrt(var + BN_EPS)
    shift = bn_beta.astype(jnp.float32) - mean * scale
    scale3 = scale.reshape(C_out, 1, 1)
    shift3 = shift.reshape(C_out, 1, 1)

    # --- phase 2: folded BN (one FMA) + ELU, written directly as NCHW --------
    y4 = y_flat.reshape(B, C_out, F_out, T1)     # free (metadata-only) reshape
    out = pl.pallas_call(
        _bn_elu_kernel,
        out_shape=jax.ShapeDtypeStruct((B, C_out, F_out, T), jnp.float32),
        grid=(B,),
        in_specs=[
            pl.BlockSpec((1, C_out, F_out, T1), lambda b: (b, 0, 0, 0)),
            pl.BlockSpec((C_out, 1, 1), lambda b: (0, 0, 0)),
            pl.BlockSpec((C_out, 1, 1), lambda b: (0, 0, 0)),
        ],
        out_specs=pl.BlockSpec((1, C_out, F_out, T), lambda b: (b, 0, 0, 0)),
        compiler_params=cparams,
    )(y4, scale3, shift3)
    return out


def _reference(x, conv_w, conv_b, bn_gamma, bn_beta):
    # Pure-JAX reference mirroring the PyTorch forward (training-mode BN).
    y = jax.lax.conv_general_dilated(
        x.astype(jnp.float32), conv_w.astype(jnp.float32),
        window_strides=(2, 1), padding=((0, 0), (1, 1)),
        dimension_numbers=("NCHW", "OIHW", "NCHW"))
    y = y + conv_b.reshape(1, -1, 1, 1)
    y = y[:, :, :, :-1]
    mean = jnp.mean(y, axis=(0, 2, 3), keepdims=True)
    var = jnp.mean((y - mean) ** 2, axis=(0, 2, 3), keepdims=True)
    y = (y - mean) / jnp.sqrt(var + BN_EPS)
    y = y * bn_gamma.reshape(1, -1, 1, 1) + bn_beta.reshape(1, -1, 1, 1)
    return jnp.where(y > 0, y, ELU_ALPHA * (jnp.exp(jnp.minimum(y, 0.0)) - 1.0))


if __name__ == "__main__":
    key = jax.random.PRNGKey(0)
    B, C_in, C_out, F, T = 2, 4, 8, 16, 16

    k1, k2, k3, k4, k5 = jax.random.split(key, 5)
    x = jax.random.normal(k1, (B, C_in, F, T), dtype=jnp.float32)
    conv_w = 0.1 * jax.random.normal(k2, (C_out, C_in, 3, 2), dtype=jnp.float32)
    conv_b = 0.1 * jax.random.normal(k3, (C_out,), dtype=jnp.float32)
    bn_gamma = 1.0 + 0.1 * jax.random.normal(k4, (C_out,), dtype=jnp.float32)
    bn_beta = 0.1 * jax.random.normal(k5, (C_out,), dtype=jnp.float32)

    ref = _reference(x, conv_w, conv_b, bn_gamma, bn_beta)

    # f32 storage path (tight check)
    out = non_causal_conv_block(x, conv_w, conv_b, bn_gamma, bn_beta)
    out = jax.block_until_ready(out)
    assert out.shape == (B, C_out, (F - 3) // 2 + 1, T), out.shape
    assert jnp.allclose(out, ref, atol=1e-3, rtol=1e-3), "f32 mismatch vs reference"

    # bf16-storage path (halves HBM traffic on v6e/v7x; math stays f32)
    out_bf16 = non_causal_conv_block(x, conv_w, conv_b, bn_gamma, bn_beta,
                                     storage_dtype=jnp.bfloat16)
    out_bf16 = jax.block_until_ready(out_bf16)
    assert jnp.allclose(out_bf16, ref, atol=8e-2, rtol=5e-2), \
        "bf16-storage mismatch vs reference"

    print("KERNEL_OK")
</pallas_src>

<mosaic_0001>
module attributes {stable_mosaic.version = 11 : i64} {
  func.func @_conv_stats_kernel(%arg0: i32, %arg1: memref<1x4x153xf32, #tpu.memory_space<vmem>>, %arg2: memref<1x4x153xf32, #tpu.memory_space<vmem>>, %arg3: memref<6x8x4xf32, #tpu.memory_space<vmem>>, %arg4: memref<1x119xf32, #tpu.memory_space<vmem>>, %arg5: memref<1x8x119xf32, #tpu.memory_space<vmem>>, %arg6: memref<1x8x1xf32, #tpu.memory_space<vmem>>, %arg7: memref<1x8x1xf32, #tpu.memory_space<vmem>>) attributes {dimension_semantics = [#tpu.dimension_semantics<parallel>], iteration_bounds = array<i64: 2>, scalar_prefetch = 0 : i64, scratch_operands = 0 : i64, tpu.core_type = #tpu.core_type<tc>, window_params = [{transform_indices = @transform_0, window_bounds = array<i64: 1, 4, 153>}, {transform_indices = @transform_1, window_bounds = array<i64: 1, 4, 153>}, {pipeline_mode = #tpu.pipeline_mode<synchronous>, transform_indices = @transform_2, window_bounds = array<i64: 6, 8, 4>}, {pipeline_mode = #tpu.pipeline_mode<synchronous>, transform_indices = @transform_3, window_bounds = array<i64: 1, 119>}, {transform_indices = @transform_4, window_bounds = array<i64: 1, 8, 119>}, {transform_indices = @transform_5, window_bounds = array<i64: 1, 8, 1>}, {transform_indices = @transform_6, window_bounds = array<i64: 1, 8, 1>}]} {
    %c0 = arith.constant 0 : index
    %c0_0 = arith.constant 0 : index
    %c0_1 = arith.constant 0 : index
    %0 = vector.load %arg1[%c0, %c0_0, %c0_1] : memref<1x4x153xf32, #tpu.memory_space<vmem>>, vector<1x4x153xf32>
    %1 = vector.shape_cast %0 : vector<1x4x153xf32> to vector<4x153xf32>
    %c0_2 = arith.constant 0 : index
    %c0_3 = arith.constant 0 : index
    %c0_4 = arith.constant 0 : index
    %2 = vector.load %arg2[%c0_2, %c0_3, %c0_4] : memref<1x4x153xf32, #tpu.memory_space<vmem>>, vector<1x4x153xf32>
    %3 = vector.shape_cast %2 : vector<1x4x153xf32> to vector<4x153xf32>
    %4 = vector.extract_strided_slice %1 {offsets = [0, 0], sizes = [4, 119], strides = [1, 1]} : vector<4x153xf32> to vector<4x119xf32>
    %5 = vector.extract_strided_slice %1 {offsets = [0, 1], sizes = [4, 119], strides = [1, 1]} : vector<4x153xf32> to vector<4x119xf32>
    %6 = vector.extract_strided_slice %3 {offsets = [0, 0], sizes = [4, 119], strides = [1, 1]} : vector<4x153xf32> to vector<4x119xf32>
    %7 = vector.extract_strided_slice %3 {offsets = [0, 1], sizes = [4, 119], strides = [1, 1]} : vector<4x153xf32> to vector<4x119xf32>
    %8 = vector.extract_strided_slice %1 {offsets = [0, 17], sizes = [4, 119], strides = [1, 1]} : vector<4x153xf32> to vector<4x119xf32>
    %9 = vector.extract_strided_slice %1 {offsets = [0, 18], sizes = [4, 119], strides = [1, 1]} : vector<4x153xf32> to vector<4x119xf32>
    %cst = arith.constant 0.000000e+00 : f32
    %10 = vector.broadcast %cst : f32 to vector<8x119xf32>
    %c0_5 = arith.constant 0 : index
    %c0_6 = arith.constant 0 : index
    %c0_7 = arith.constant 0 : index
    %11 = vector.load %arg3[%c0_5, %c0_6, %c0_7] : memref<6x8x4xf32, #tpu.memory_space<vmem>>, vector<1x8x4xf32>
    %12 = vector.shape_cast %11 : vector<1x8x4xf32> to vector<8x4xf32>
    %cst_8 = arith.constant dense<0.000000e+00> : vector<8x119xf32>
    %13 = tpu.matmul %12, %4, %cst_8 {dimension_numbers = #tpu.dot_dimension_numbers<[1], [0], [0], [1], [0, 0, 1, 1], [], []>} : vector<8x4xf32>, vector<4x119xf32>, vector<8x119xf32> -> vector<8x119xf32>
    %14 = arith.addf %10, %13 : vector<8x119xf32>
    %c1 = arith.constant 1 : index
    %c0_9 = arith.constant 0 : index
    %c0_10 = arith.constant 0 : index
    %15 = vector.load %arg3[%c1, %c0_9, %c0_10] : memref<6x8x4xf32, #tpu.memory_space<vmem>>, vector<1x8x4xf32>
    %16 = vector.shape_cast %15 : vector<1x8x4xf32> to vector<8x4xf32>
    %cst_11 = arith.constant dense<0.000000e+00> : vector<8x119xf32>
    %17 = tpu.matmul %16, %5, %cst_11 {dimension_numbers = #tpu.dot_dimension_numbers<[1], [0], [0], [1], [0, 0, 1, 1], [], []>} : vector<8x4xf32>, vector<4x119xf32>, vector<8x119xf32> -> vector<8x119xf32>
    %18 = arith.addf %14, %17 : vector<8x119xf32>
    %c2 = arith.constant 2 : index
    %c0_12 = arith.constant 0 : index
    %c0_13 = arith.constant 0 : index
    %19 = vector.load %arg3[%c2, %c0_12, %c0_13] : memref<6x8x4xf32, #tpu.memory_space<vmem>>, vector<1x8x4xf32>
    %20 = vector.shape_cast %19 : vector<1x8x4xf32> to vector<8x4xf32>
    %cst_14 = arith.constant dense<0.000000e+00> : vector<8x119xf32>
    %21 = tpu.matmul %20, %6, %cst_14 {dimension_numbers = #tpu.dot_dimension_numbers<[1], [0], [0], [1], [0, 0, 1, 1], [], []>} : vector<8x4xf32>, vector<4x119xf32>, vector<8x119xf32> -> vector<8x119xf32>
    %22 = arith.addf %18, %21 : vector<8x119xf32>
    %c3 = arith.constant 3 : index
    %c0_15 = arith.constant 0 : index
    %c0_16 = arith.constant 0 : index
    %23 = vector.load %arg3[%c3, %c0_15, %c0_16] : memref<6x8x4xf32, #tpu.memory_space<vmem>>, vector<1x8x4xf32>
    %24 = vector.shape_cast %23 : vector<1x8x4xf32> to vector<8x4xf32>
    %cst_17 = arith.constant dense<0.000000e+00> : vector<8x119xf32>
    %25 = tpu.matmul %24, %7, %cst_17 {dimension_numbers = #tpu.dot_dimension_numbers<[1], [0], [0], [1], [0, 0, 1, 1], [], []>} : vector<8x4xf32>, vector<4x119xf32>, vector<8x119xf32> -> vector<8x119xf32>
    %26 = arith.addf %22, %25 : vector<8x119xf32>
    %c4 = arith.constant 4 : index
    %c0_18 = arith.constant 0 : index
    %c0_19 = arith.constant 0 : index
    %27 = vector.load %arg3[%c4, %c0_18, %c0_19] : memref<6x8x4xf32, #tpu.memory_space<vmem>>, vector<1x8x4xf32>
    %28 = vector.shape_cast %27 : vector<1x8x4xf32> to vector<8x4xf32>
    %cst_20 = arith.constant dense<0.000000e+00> : vector<8x119xf32>
    %29 = tpu.matmul %28, %8, %cst_20 {dimension_numbers = #tpu.dot_dimension_numbers<[1], [0], [0], [1], [0, 0, 1, 1], [], []>} : vector<8x4xf32>, vector<4x119xf32>, vector<8x119xf32> -> vector<8x119xf32>
    %30 = arith.addf %26, %29 : vector<8x119xf32>
    %c5 = arith.constant 5 : index
    %c0_21 = arith.constant 0 : index
    %c0_22 = arith.constant 0 : index
    %31 = vector.load %arg3[%c5, %c0_21, %c0_22] : memref<6x8x4xf32, #tpu.memory_space<vmem>>, vector<1x8x4xf32>
    %32 = vector.shape_cast %31 : vector<1x8x4xf32> to vector<8x4xf32>
    %cst_23 = arith.constant dense<0.000000e+00> : vector<8x119xf32>
    %33 = tpu.matmul %32, %9, %cst_23 {dimension_numbers = #tpu.dot_dimension_numbers<[1], [0], [0], [1], [0, 0, 1, 1], [], []>} : vector<8x4xf32>, vector<4x119xf32>, vector<8x119xf32> -> vector<8x119xf32>
    %34 = arith.addf %30, %33 : vector<8x119xf32>
    %c0_24 = arith.constant 0 : index
    %c0_25 = arith.constant 0 : index
    %c0_26 = arith.constant 0 : index
    %35 = vector.load %arg5[%c0_24, %c0_25, %c0_26] : memref<1x8x119xf32, #tpu.memory_space<vmem>>, vector<1x8x119xf32>
    %36 = vector.shape_cast %35 : vector<1x8x119xf32> to vector<8x119xf32>
    %37 = vector.shape_cast %34 : vector<8x119xf32> to vector<1x8x119xf32>
    tpu.vector_store %arg5[%c0_24, %c0_25, %c0_26], %37 {strides = array<i32>} : memref<1x8x119xf32, #tpu.memory_space<vmem>>, vector<1x8x119xf32>,
    %c0_27 = arith.constant 0 : index
    %c0_28 = arith.constant 0 : index
    %38 = vector.load %arg4[%c0_27, %c0_28] : memref<1x119xf32, #tpu.memory_space<vmem>>, vector<1x119xf32>
    %39 = vector.broadcast %38 : vector<1x119xf32> to vector<8x119xf32>
    %40 = arith.mulf %34, %39 : vector<8x119xf32>
    %cst_29 = arith.constant dense<0.000000e+00> : vector<8xf32>
    %41 = vector.multi_reduction <add>, %40, %cst_29 [1] : vector<8x119xf32> to vector<8xf32>
    %42 = vector.shape_cast %41 : vector<8xf32> to vector<8x1xf32>
    %c0_30 = arith.constant 0 : index
    %c0_31 = arith.constant 0 : index
    %c0_32 = arith.constant 0 : index
    %43 = vector.load %arg6[%c0_30, %c0_31, %c0_32] : memref<1x8x1xf32, #tpu.memory_space<vmem>>, vector<1x8x1xf32>
    %44 = vector.shape_cast %43 : vector<1x8x1xf32> to vector<8x1xf32>
    %45 = vector.shape_cast %42 : vector<8x1xf32> to vector<1x8x1xf32>
    tpu.vector_store %arg6[%c0_30, %c0_31, %c0_32], %45 {strides = array<i32>} : memref<1x8x1xf32, #tpu.memory_space<vmem>>, vector<1x8x1xf32>,
    %46 = arith.mulf %40, %34 : vector<8x119xf32>
    %cst_33 = arith.constant dense<0.000000e+00> : vector<8xf32>
    %47 = vector.multi_reduction <add>, %46, %cst_33 [1] : vector<8x119xf32> to vector<8xf32>
    %48 = vector.shape_cast %47 : vector<8xf32> to vector<8x1xf32>
    %c0_34 = arith.constant 0 : index
    %c0_35 = arith.constant 0 : index
    %c0_36 = arith.constant 0 : index
    %49 = vector.load %arg7[%c0_34, %c0_35, %c0_36] : memref<1x8x1xf32, #tpu.memory_space<vmem>>, vector<1x8x1xf32>
    %50 = vector.shape_cast %49 : vector<1x8x1xf32> to vector<8x1xf32>
    %51 = vector.shape_cast %48 : vector<8x1xf32> to vector<1x8x1xf32>
    tpu.vector_store %arg7[%c0_34, %c0_35, %c0_36], %51 {strides = array<i32>} : memref<1x8x1xf32, #tpu.memory_space<vmem>>, vector<1x8x1xf32>,
    return
  }
  func.func @transform_0(%arg0: i32) -> (i32, i32, i32) {
    %c0_i32 = arith.constant 0 : i32
    %c0_i32_0 = arith.constant 0 : i32
    %c0_i32_1 = arith.constant 0 : i32
    return %arg0, %c0_i32, %c0_i32_0 : i32, i32, i32
  }
  func.func @transform_1(%arg0: i32) -> (i32, i32, i32) {
    %c0_i32 = arith.constant 0 : i32
    %c0_i32_0 = arith.constant 0 : i32
    %c0_i32_1 = arith.constant 0 : i32
    return %arg0, %c0_i32, %c0_i32_0 : i32, i32, i32
  }
  func.func @transform_2(%arg0: i32) -> (i32, i32, i32) {
    %c0_i32 = arith.constant 0 : i32
    %c0_i32_0 = arith.constant 0 : i32
    %c0_i32_1 = arith.constant 0 : i32
    %c0_i32_2 = arith.constant 0 : i32
    return %c0_i32, %c0_i32_0, %c0_i32_1 : i32, i32, i32
  }
  func.func @transform_3(%arg0: i32) -> (i32, i32) {
    %c0_i32 = arith.constant 0 : i32
    %c0_i32_0 = arith.constant 0 : i32
    %c0_i32_1 = arith.constant 0 : i32
    return %c0_i32, %c0_i32_0 : i32, i32
  }
  func.func @transform_4(%arg0: i32) -> (i32, i32, i32) {
    %c0_i32 = arith.constant 0 : i32
    %c0_i32_0 = arith.constant 0 : i32
    %c0_i32_1 = arith.constant 0 : i32
    return %arg0, %c0_i32, %c0_i32_0 : i32, i32, i32
  }
  func.func @transform_5(%arg0: i32) -> (i32, i32, i32) {
    %c0_i32 = arith.constant 0 : i32
    %c0_i32_0 = arith.constant 0 : i32
    %c0_i32_1 = arith.constant 0 : i32
    return %arg0, %c0_i32, %c0_i32_0 : i32, i32, i32
  }
  func.func @transform_6(%arg0: i32) -> (i32, i32, i32) {
    %c0_i32 = arith.constant 0 : i32
    %c0_i32_0 = arith.constant 0 : i32
    %c0_i32_1 = arith.constant 0 : i32
    return %arg0, %c0_i32, %c0_i32_0 : i32, i32, i32
  }
}

</mosaic_0001>

<llo_original>
// kernel: tpu_custom_call.1
$region0: #{tpu_custom_call.1}
  #allocation0 [shape = 'u32[]', space=smem, size = 0x4, offset = 0x4, fixed_abs, tag = 'smem constant byte address 0x4 - core index']
  #allocation1 [shape = 'u32[144,128]{1,0:T(1,128)}', space=vmem, size = 0x12000, scoped, tag = 'internal scratch']
  %s0 = inlined_call_operand.vmem [shape: f32[2,4,153], index: 0, kind: input, shape index: {}]
  %s1 = inlined_call_operand.vmem [shape: f32[2,4,153], index: 1, kind: input, shape index: {}]
  %s2 = inlined_call_operand.vmem [shape: f32[6,8,4], index: 2, kind: input, shape index: {}]
  %s3 = inlined_call_operand.vmem [shape: f32[1,119], index: 3, kind: input, shape index: {}]
  %s4 = inlined_call_operand.hbm [shape: f32[2,8,119], index: 4, kind: output, shape index: {0}]
  %s5 = inlined_call_operand.vmem [shape: f32[2,8,1], index: 5, kind: output, shape index: {1}]
  %s6 = inlined_call_operand.vmem [shape: f32[2,8,1], index: 6, kind: output, shape index: {2}]
  %7 = xla_tuple %s4, %s5, %s6
  %s8 = sld [smem:[#allocation0]]
  $region65: #{tpu_custom_call.1} parent=0
    _
  %s10 = ssub.s32 1, %s8
  %s11 = scalar_select 0, %s10, %s8
  $region1: #{tpu_custom_call.1} parent=0
    #allocation2 [shape = 'u8[8192]{0}', space=vmem, size = 0x2000, scoped, tag = 'output window, operand 0']
    #allocation3 [shape = 's32[2]{0}', space=sflag, size = 0x8, scoped, tag = 'scoped memory for tpu_custom_call.1']
    %12 = vsyncpa [#allocation3], 0
    %s13 = scalar_lea.sflag [#allocation3], 1
    %14 = vsyncpa %s13, 0
    loop: start=0, step=1, limit=4
    $region2: #{tpu_custom_call.1} parent=1 // loop_pre_header
      _
    $region3: #{tpu_custom_call.1} parent=1 // loop_header
      %s16 = sphi 0, %s20
      %p17 = scmp.ge.s32.totalorder %s16, 4
      %s26 = sphi 0, %s28
      %s29 = sphi 0, %s26
      %s30 = sphi 0, %s29
      %s46 = sphi 0, %s30
      %s52 = sphi 0, %s54
      %s55 = sphi 0, %s52
      %s56 = sphi 0, %s55
      %s72 = sphi 0, %s56
      %s76 = sphi 0, %s76
      %s78 = sphi 0, %s76
      %s79 = sphi 0, %s78
      %s93 = sphi 0, %s79
      %s97 = sphi 0, %s97
      %s99 = sphi 0, %s97
      %s100 = sphi 0, %s99
      %s114 = sphi 0, %s100
      %s120 = sphi 0, %s122
      %s123 = sphi 0, %s120
      %s124 = sphi 0, %s123
      %s140 = sphi 0, %s124
      %s146 = sphi 0, %s148
      %s149 = sphi 0, %s146
      %s150 = sphi 0, %s149
      %s166 = sphi 0, %s150
      %s172 = sphi 0, %s174
      %s175 = sphi 0, %s172
      %s176 = sphi 0, %s175
      %s192 = sphi 0, %s176
    $region4: #{tpu_custom_call.1} parent=1 // loop_header_branch
      %19 = sbr.rel (%p17) target = $region8
    $region5: #{tpu_custom_call.1} parent=1 // loop_body
      %s21 = ssub.s32 %s16, 1
      %s22 = ssub.s32 %s16, 2
      %s23 = sadd.s32 %s16, 1
      %s24 = ssub.s32 %s16, %s23
      %p25 = scmp.eq.s32.totalorder %s24, 0
      %s27 = sadd.s32 %s26, 1
      %s28 = scalar_select %p25, %s26, %s27
      %p31 = pneg %p25
      %p32 = scmp.eq.s32.totalorder %s16, 1
      %p33 = por %p31, %p32
      %p34 = scmp.ne.s32.totalorder %s26, %s29
      %p35 = scmp.eq.s32.totalorder %s16, 0
      %p36 = por %p34, %p35
      %p37 = scmp.ne.s32.totalorder %s26, %s29
      %p38 = scmp.eq.s32.totalorder %s21, 1
      %p39 = por %p37, %p38
      %p40 = scmp.ne.s32.totalorder %s29, %s30
      %p41 = scmp.eq.s32.totalorder %s21, 0
      %p42 = por %p40, %p41
      %p43 = scmp.ne.s32.totalorder %s29, %s30
      %p44 = scmp.eq.s32.totalorder %s22, 1
      %p45 = por %p43, %p44
      %p47 = scmp.ne.s32.totalorder %s30, %s46
      %p48 = scmp.eq.s32.totalorder %s22, 0
      %p49 = por %p47, %p48
      %s50 = ssub.s32 %s16, %s23
      %p51 = scmp.eq.s32.totalorder %s50, 0
      %s53 = sadd.s32 %s52, 1
      %s54 = scalar_select %p51, %s52, %s53
      %p57 = pneg %p51
      %p58 = scmp.eq.s32.totalorder %s16, 1
      %p59 = por %p57, %p58
      %p60 = scmp.ne.s32.totalorder %s52, %s55
      %p61 = scmp.eq.s32.totalorder %s16, 0
      %p62 = por %p60, %p61
      %p63 = scmp.ne.s32.totalorder %s52, %s55
      %p64 = scmp.eq.s32.totalorder %s21, 1
      %p65 = por %p63, %p64
      %p66 = scmp.ne.s32.totalorder %s55, %s56
      %p67 = scmp.eq.s32.totalorder %s21, 0
      %p68 = por %p66, %p67
      %p69 = scmp.ne.s32.totalorder %s55, %s56
      %p70 = scmp.eq.s32.totalorder %s22, 1
      %p71 = por %p69, %p70
      %p73 = scmp.ne.s32.totalorder %s56, %s72
      %p74 = scmp.eq.s32.totalorder %s22, 0
      %p75 = por %p73, %p74
      %s77 = sadd.s32 %s76, 1
      %p80 = scmp.eq.s32.totalorder %s16, 1
      %p81 = scmp.ne.s32.totalorder %s76, %s78
      %p82 = scmp.eq.s32.totalorder %s16, 0
      %p83 = por %p81, %p82
      %p84 = scmp.ne.s32.totalorder %s76, %s78
      %p85 = scmp.eq.s32.totalorder %s21, 1
      %p86 = por %p84, %p85
      %p87 = scmp.ne.s32.totalorder %s78, %s79
      %p88 = scmp.eq.s32.totalorder %s21, 0
      %p89 = por %p87, %p88
      %p90 = scmp.ne.s32.totalorder %s78, %s79
      %p91 = scmp.eq.s32.totalorder %s22, 1
      %p92 = por %p90, %p91
      %p94 = scmp.ne.s32.totalorder %s79, %s93
      %p95 = scmp.eq.s32.totalorder %s22, 0
      %p96 = por %p94, %p95
      %s98 = sadd.s32 %s97, 1
      %p101 = scmp.eq.s32.totalorder %s16, 1
      %p102 = scmp.ne.s32.totalorder %s97, %s99
      %p103 = scmp.eq.s32.totalorder %s16, 0
      %p104 = por %p102, %p103
      %p105 = scmp.ne.s32.totalorder %s97, %s99
      %p106 = scmp.eq.s32.totalorder %s21, 1
      %p107 = por %p105, %p106
      %p108 = scmp.ne.s32.totalorder %s99, %s100
      %p109 = scmp.eq.s32.totalorder %s21, 0
      %p110 = por %p108, %p109
      %p111 = scmp.ne.s32.totalorder %s99, %s100
      %p112 = scmp.eq.s32.totalorder %s22, 1
      %p113 = por %p111, %p112
      %p115 = scmp.ne.s32.totalorder %s100, %s114
      %p116 = scmp.eq.s32.totalorder %s22, 0
      %p117 = por %p115, %p116
      %s118 = ssub.s32 %s16, %s23
      %p119 = scmp.eq.s32.totalorder %s118, 0
      %s121 = sadd.s32 %s120, 1
      %s122 = scalar_select %p119, %s120, %s121
      %p125 = pneg %p119
      %p126 = scmp.eq.s32.totalorder %s16, 1
      %p127 = por %p125, %p126
      %p128 = scmp.ne.s32.totalorder %s120, %s123
      %p129 = scmp.eq.s32.totalorder %s16, 0
      %p130 = por %p128, %p129
      %p131 = scmp.ne.s32.totalorder %s120, %s123
      %p132 = scmp.eq.s32.totalorder %s21, 1
      %p133 = por %p131, %p132
      %p134 = scmp.ne.s32.totalorder %s123, %s124
      %p135 = scmp.eq.s32.totalorder %s21, 0
      %p136 = por %p134, %p135
      %p137 = scmp.ne.s32.totalorder %s123, %s124
      %p138 = scmp.eq.s32.totalorder %s22, 1
      %p139 = por %p137, %p138
      %p141 = scmp.ne.s32.totalorder %s124, %s140
      %p142 = scmp.eq.s32.totalorder %s22, 0
      %p143 = por %p141, %p142
      %s144 = ssub.s32 %s16, %s23
      %p145 = scmp.eq.s32.totalorder %s144, 0
      %s147 = sadd.s32 %s146, 1
      %s148 = scalar_select %p145, %s146, %s147
      %p151 = pneg %p145
      %p152 = scmp.eq.s32.totalorder %s16, 1
      %p153 = por %p151, %p152
      %p154 = scmp.ne.s32.totalorder %s146, %s149
      %p155 = scmp.eq.s32.totalorder %s16, 0
      %p156 = por %p154, %p155
      %p157 = scmp.ne.s32.totalorder %s146, %s149
      %p158 = scmp.eq.s32.totalorder %s21, 1
      %p159 = por %p157, %p158
      %p160 = scmp.ne.s32.totalorder %s149, %s150
      %p161 = scmp.eq.s32.totalorder %s21, 0
      %p162 = por %p160, %p161
      %p163 = scmp.ne.s32.totalorder %s149, %s150
      %p164 = scmp.eq.s32.totalorder %s22, 1
      %p165 = por %p163, %p164
      %p167 = scmp.ne.s32.totalorder %s150, %s166
      %p168 = scmp.eq.s32.totalorder %s22, 0
      %p169 = por %p167, %p168
      %s170 = ssub.s32 %s16, %s23
      %p171 = scmp.eq.s32.totalorder %s170, 0
      %s173 = sadd.s32 %s172, 1
      %s174 = scalar_select %p171, %s172, %s173
      %p177 = pneg %p171
      %p178 = scmp.eq.s32.totalorder %s16, 1
      %p179 = por %p177, %p178
      %p180 = scmp.ne.s32.totalorder %s172, %s175
      %p181 = scmp.eq.s32.totalorder %s16, 0
      %p182 = por %p180, %p181
      %p183 = scmp.ne.s32.totalorder %s172, %s175
      %p184 = scmp.eq.s32.totalorder %s21, 1
      %p185 = por %p183, %p184
      %p186 = scmp.ne.s32.totalorder %s175, %s176
      %p187 = scmp.eq.s32.totalorder %s21, 0
      %p188 = por %p186, %p187
      %p189 = scmp.ne.s32.totalorder %s175, %s176
      %p190 = scmp.eq.s32.totalorder %s22, 1
      %p191 = por %p189, %p190
      %p193 = scmp.ne.s32.totalorder %s176, %s192
      %p194 = scmp.eq.s32.totalorder %s22, 0
      %p195 = por %p193, %p194
      %p196 = scmp.le.s32.totalorder 1, %s16
      %p197 = scmp.lt.s32.totalorder %s16, 3
      %p198 = pnand %p196, %p197
      %p199 = pneg %p198
      // Predicated region
      $region9: #{tpu_custom_call.1} parent=5 // pred_check
        _
      $region10: #{tpu_custom_call.1} parent=5 // pred_check_branch
        %201 = sbr.rel (%p198) target = $region12
      $region11: #{tpu_custom_call.1} parent=5 // pred_region
        %s202 = ssub.s32 %s16, 1
        // Predicated region
        $region13: #{tpu_custom_call.1} parent=11 // pred_check
          %p203 = pneg %p89
        $region14: #{tpu_custom_call.1} parent=11 // pred_check_branch
          %205 = sbr.rel (%p203) target = $region16
        $region15: #{tpu_custom_call.1} parent=11 // pred_region
          _
        $region16: #{tpu_custom_call.1} parent=11 // pred_fallthru
          _
        // Predicated region
        $region17: #{tpu_custom_call.1} parent=11 // pred_check
          %p206 = pneg %p110
        $region18: #{tpu_custom_call.1} parent=11 // pred_check_branch
          %208 = sbr.rel (%p206) target = $region20
        $region19: #{tpu_custom_call.1} parent=11 // pred_region
          _
        $region20: #{tpu_custom_call.1} parent=11 // pred_fallthru
          _
      $region12: #{tpu_custom_call.1} parent=5 // pred_fallthru
        _
      %p209 = scmp.lt.s32.totalorder %s16, 2
      // Predicated region
      $region21: #{tpu_custom_call.1} parent=5 // pred_check
        %p210 = pneg %p209
      $region22: #{tpu_custom_call.1} parent=5 // pred_check_branch
        %212 = sbr.rel (%p210) target = $region24
      $region23: #{tpu_custom_call.1} parent=5 // pred_region
        // Predicated region
        $region25: #{tpu_custom_call.1} parent=23 // pred_check
          %p213 = pneg %p36
        $region26: #{tpu_custom_call.1} parent=23 // pred_check_branch
          %215 = sbr.rel (%p213) target = $region28
        $region27: #{tpu_custom_call.1} parent=23 // pred_region
          %p216 = scmp.lt.s32.totalorder %s16, 1
          %s217 = scalar_select %p216, %s16, 1
          %s218 = smul.addr %s217, 2
          %s219 = smul.addr %s218, 4
          %s220 = scalar_lea.vmem %s0, %s219
        $region28: #{tpu_custom_call.1} parent=23 // pred_fallthru
          _
        // Predicated region
        $region29: #{tpu_custom_call.1} parent=23 // pred_check
          %p221 = pneg %p62
        $region30: #{tpu_custom_call.1} parent=23 // pred_check_branch
          %223 = sbr.rel (%p221) target = $region32
        $region31: #{tpu_custom_call.1} parent=23 // pred_region
          %p224 = scmp.lt.s32.totalorder %s16, 1
          %s225 = scalar_select %p224, %s16, 1
          %s226 = smul.addr %s225, 2
          %s227 = smul.addr %s226, 4
          %s228 = scalar_lea.vmem %s1, %s227
        $region32: #{tpu_custom_call.1} parent=23 // pred_fallthru
          _
      $region24: #{tpu_custom_call.1} parent=5 // pred_fallthru
        _
      %p229 = scmp.le.s32.totalorder 1, %s16
      %p230 = scmp.lt.s32.totalorder %s16, 3
      %p231 = pnand %p229, %p230
      %p232 = pneg %p231
      // Predicated region
      $region33: #{tpu_custom_call.1} parent=5 // pred_check
        _
      $region34: #{tpu_custom_call.1} parent=5 // pred_check_branch
        %234 = sbr.rel (%p231) target = $region36
      $region35: #{tpu_custom_call.1} parent=5 // pred_region
        %s235 = ssub.s32 %s16, 1
        %p236 = scmp.lt.s32.totalorder %s21, 1
        %s237 = scalar_select %p236, %s21, 1
        %s238 = smul.addr %s237, 2
        %s239 = smul.addr %s238, 4
        %s240 = scalar_lea.vmem %s0, %s239
        %p241 = pneg %p42
        %p242 = pneg %p39
        %p243 = scmp.lt.s32.totalorder %s21, 1
        %s244 = scalar_select %p243, %s21, 1
        %s245 = smul.addr %s244, 2
        %s246 = smul.addr %s245, 4
        %s247 = scalar_lea.vmem %s1, %s246
        %p248 = pneg %p68
        %p249 = pneg %p65
        %p250 = pneg %p89
        %p251 = pneg %p86
        %p252 = pneg %p110
        %p253 = pneg %p107
        %p254 = pneg %p136
        %p255 = pneg %p133
        %s256 = sand.u32 %s123, 1
        %s257 = scalar_lea.sflag [#allocation3], %s256
        %s258 = sand.u32 %s123, 1
        %s259 = smul.addr %s258, 8
        %s260 = scalar_lea.vmem [#allocation2], %s259
        %p261 = pneg %p162
        %p262 = pneg %p159
        %p263 = scmp.lt.s32.totalorder %s21, 1
        %s264 = scalar_select %p263, %s21, 1
        %s265 = smul.addr %s264, 8
        %s266 = scalar_lea.vmem %s5, %s265
        %p267 = pneg %p188
        %p268 = pneg %p185
        %p269 = scmp.lt.s32.totalorder %s21, 1
        %s270 = scalar_select %p269, %s21, 1
        %s271 = smul.addr %s270, 8
        %s272 = scalar_lea.vmem %s6, %s271
        %p273 = scmp.lt.s32.totalorder %s21, 1
        %s274 = scalar_select %p273, %s21, 1
        %s275 = smul.addr %s274, 2
        %s276 = smul.addr %s275, 4
        %s277 = scalar_lea.vmem %s0, %s276
        %p278 = scmp.lt.s32.totalorder %s21, 1
        %s279 = scalar_select %p278, %s21, 1
        %s280 = smul.addr %s279, 2
        %s281 = smul.addr %s280, 4
        %s282 = scalar_lea.vmem %s1, %s281
        %p283 = scmp.lt.s32.totalorder %s21, 1
        %s284 = scalar_select %p283, %s21, 1
        %s285 = smul.addr %s284, 8
        %s286 = scalar_lea.vmem %s5, %s285
        %p287 = scmp.lt.s32.totalorder %s21, 1
        %s288 = scalar_select %p287, %s21, 1
        %s289 = smul.addr %s288, 8
        %s290 = scalar_lea.vmem %s6, %s289
        %v291 = vld [vmem:[%s277] sm:$0xff]
        %v292 = vld [vmem:[%s282] sm:$0xff]
        %v293 = vld [vmem:[%s2] sm:$0xff]
        %s294 = scalar_lea.vmem %s2, 8
        %v295 = vld [vmem:[%s294] sm:$0xff]
        %297 = vrot.lane.b32.xlu0 %v291, 127
        %v298 = vpop.permute.xlu0 %297
        %vm299 = vcmask 31744
        %v301 = vsel %vm299, %v295, 0
        %vm303 = vcmask 1043456
        %v304 = vsel %vm303, %v298, 0
        %306 = vmatprep.subr.mxu0 0.0
        %307 = vmatpush1.msra.mxu0 %v304
        %308 = vmatprep.subr.mxu0 0.0
        %309 = vmatpush1.msra.mxu0 0.0
        %310 = vmatprep.subr.mxu0 0.0
        %311 = vmatpush1.msra.mxu0 0.0
        %312 = vmatprep.subr.mxu0 0.0
        %313 = vmatpush1.msra.mxu0 0.0
        %314 = vmatprep.subr.mxu0 0.0
        %315 = vmatpush1.msra.mxu0 0.0
        %316 = vmatprep.subr.mxu0 0.0
        %317 = vmatpush1.msra.mxu0 0.0
        %318 = vmatprep.subr.mxu0 0.0
        %319 = vmatpush1.msra.mxu0 0.0
        %320 = vmatprep.subr.mxu0 0.0
        %321 = vmatpush1.msra.mxu0 0.0
        %322 = vmatprep.subr.mxu0 0.0
        %323 = vmatpush1.msra.mxu0 0.0
        %324 = vmatprep.subr.mxu0 0.0
        %325 = vmatpush1.msra.mxu0 0.0
        %326 = vmatprep.subr.mxu0 0.0
        %327 = vmatpush1.msra.mxu0 0.0
        %328 = vmatprep.subr.mxu0 0.0
        %329 = vmatpush1.msra.mxu0 0.0
        %330 = vmatprep.subr.mxu0 0.0
        %331 = vmatpush1.msra.mxu0 0.0
        %332 = vmatprep.subr.mxu0 0.0
        %333 = vmatpush1.msra.mxu0 0.0
        %334 = vmatprep.subr.mxu0 0.0
        %335 = vmatpush1.msra.mxu0 0.0
        %336 = vmatprep.subr.mxu0 0.0
        %337 = vmatpush1.msra.mxu0 0.0
        %338 = vmatprep.subr.mxu0 0.0
        %339 = vmatpush1.msra.mxu0 0.0
        %340 = vmatprep.subr.mxu0 0.0
        %341 = vmatpush1.msra.mxu0 0.0
        %342 = vmatprep.subr.mxu0 0.0
        %343 = vmatpush1.msra.mxu0 0.0
        %344 = vmatprep.subr.mxu0 0.0
        %345 = vmatpush1.msra.mxu0 0.0
        %346 = vmatprep.subr.mxu0 0.0
        %347 = vmatpush1.msra.mxu0 0.0
        %348 = vmatprep.subr.mxu0 0.0
        %349 = vmatpush1.msra.mxu0 0.0
        %350 = vmatprep.subr.mxu0 0.0
        %351 = vmatpush1.msra.mxu0 0.0
        %352 = vmatprep.subr.mxu0 0.0
        %353 = vmatpush1.msra.mxu0 0.0
        %354 = vmatprep.subr.mxu0 0.0
        %355 = vmatpush1.msra.mxu0 0.0
        %356 = vmatprep.subr.mxu0 0.0
        %357 = vmatpush1.msra.mxu0 0.0
        %358 = vmatprep.subr.mxu0 0.0
        %359 = vmatpush1.msra.mxu0 0.0
        %360 = vmatprep.subr.mxu0 0.0
        %361 = vmatpush1.msra.mxu0 0.0
        %362 = vmatprep.subr.mxu0 0.0
        %363 = vmatpush1.msra.mxu0 0.0
        %364 = vmatprep.subr.mxu0 0.0
        %365 = vmatpush1.msra.mxu0 0.0
        %366 = vmatprep.subr.mxu0 0.0
        %367 = vmatpush1.msra.mxu0 0.0
        %368 = vmatprep.subr.mxu0 0.0
        %369 = vmatpush1.msra.mxu0 0.0
        %370 = vmatprep.mubr.f32.mxu0 0.0
        %371 = vmatmul.mubr.f32.gmra.mrb[0].mxu0 %v301
        %v372 = vpop.f32.mrb[0].mxu0
        %v373 = vadd.f32 0.0, %v372
        %v374 = vpop.f32.mrb[0].mxu0
        %375 = vdwg.mxu0
        %v377 = vsel %vm299, %v293, 0
        %v379 = vsel %vm303, %v291, 0
        %381 = vmatprep.subr.mxu0 0.0
        %382 = vmatpush1.msra.mxu0 %v379
        %383 = vmatprep.subr.mxu0 0.0
        %384 = vmatpush1.msra.mxu0 0.0
        %385 = vmatprep.subr.mxu0 0.0
        %386 = vmatpush1.msra.mxu0 0.0
        %387 = vmatprep.subr.mxu0 0.0
        %388 = vmatpush1.msra.mxu0 0.0
        %389 = vmatprep.subr.mxu0 0.0
        %390 = vmatpush1.msra.mxu0 0.0
        %391 = vmatprep.subr.mxu0 0.0
        %392 = vmatpush1.msra.mxu0 0.0
        %393 = vmatprep.subr.mxu0 0.0
        %394 = vmatpush1.msra.mxu0 0.0
        %395 = vmatprep.subr.mxu0 0.0
        %396 = vmatpush1.msra.mxu0 0.0
        %397 = vmatprep.subr.mxu0 0.0
        %398 = vmatpush1.msra.mxu0 0.0
        %399 = vmatprep.subr.mxu0 0.0
        %400 = vmatpush1.msra.mxu0 0.0
        %401 = vmatprep.subr.mxu0 0.0
        %402 = vmatpush1.msra.mxu0 0.0
        %403 = vmatprep.subr.mxu0 0.0
        %404 = vmatpush1.msra.mxu0 0.0
        %405 = vmatprep.subr.mxu0 0.0
        %406 = vmatpush1.msra.mxu0 0.0
        %407 = vmatprep.subr.mxu0 0.0
        %408 = vmatpush1.msra.mxu0 0.0
        %409 = vmatprep.subr.mxu0 0.0
        %410 = vmatpush1.msra.mxu0 0.0
        %411 = vmatprep.subr.mxu0 0.0
        %412 = vmatpush1.msra.mxu0 0.0
        %413 = vmatprep.subr.mxu0 0.0
        %414 = vmatpush1.msra.mxu0 0.0
        %415 = vmatprep.subr.mxu0 0.0
        %416 = vmatpush1.msra.mxu0 0.0
        %417 = vmatprep.subr.mxu0 0.0
        %418 = vmatpush1.msra.mxu0 0.0
        %419 = vmatprep.subr.mxu0 0.0
        %420 = vmatpush1.msra.mxu0 0.0
        %421 = vmatprep.subr.mxu0 0.0
        %422 = vmatpush1.msra.mxu0 0.0
        %423 = vmatprep.subr.mxu0 0.0
        %424 = vmatpush1.msra.mxu0 0.0
        %425 = vmatprep.subr.mxu0 0.0
        %426 = vmatpush1.msra.mxu0 0.0
        %427 = vmatprep.subr.mxu0 0.0
        %428 = vmatpush1.msra.mxu0 0.0
        %429 = vmatprep.subr.mxu0 0.0
        %430 = vmatpush1.msra.mxu0 0.0
        %431 = vmatprep.subr.mxu0 0.0
        %432 = vmatpush1.msra.mxu0 0.0
        %433 = vmatprep.subr.mxu0 0.0
        %434 = vmatpush1.msra.mxu0 0.0
        %435 = vmatprep.subr.mxu0 0.0
        %436 = vmatpush1.msra.mxu0 0.0
        %437 = vmatprep.subr.mxu0 0.0
        %438 = vmatpush1.msra.mxu0 0.0
        %439 = vmatprep.subr.mxu0 0.0
        %440 = vmatpush1.msra.mxu0 0.0
        %441 = vmatprep.subr.mxu0 0.0
        %442 = vmatpush1.msra.mxu0 0.0
        %443 = vmatprep.subr.mxu0 0.0
        %444 = vmatpush1.msra.mxu0 0.0
        %445 = vmatprep.mubr.f32.mxu0 0.0
        %446 = vmatmul.mubr.f32.gmra.mrb[0].mxu0 %v377
        %v447 = vpop.f32.mrb[0].mxu0
        %v448 = vadd.f32 %v373, %v447
        %v449 = vpop.f32.mrb[0].mxu0
        %450 = vdwg.mxu0
        %s451 = scalar_lea.vmem %s2, 16
        %v452 = vld [vmem:[%s451] sm:$0xff]
        %v454 = vsel %vm299, %v452, 0
        %v457 = vsel %vm303, %v292, 0
        %459 = vmatprep.subr.mxu0 0.0
        %460 = vmatpush1.msra.mxu0 %v457
        %461 = vmatprep.subr.mxu0 0.0
        %462 = vmatpush1.msra.mxu0 0.0
        %463 = vmatprep.subr.mxu0 0.0
        %464 = vmatpush1.msra.mxu0 0.0
        %465 = vmatprep.subr.mxu0 0.0
        %466 = vmatpush1.msra.mxu0 0.0
        %467 = vmatprep.subr.mxu0 0.0
        %468 = vmatpush1.msra.mxu0 0.0
        %469 = vmatprep.subr.mxu0 0.0
        %470 = vmatpush1.msra.mxu0 0.0
        %471 = vmatprep.subr.mxu0 0.0
        %472 = vmatpush1.msra.mxu0 0.0
        %473 = vmatprep.subr.mxu0 0.0
        %474 = vmatpush1.msra.mxu0 0.0
        %475 = vmatprep.subr.mxu0 0.0
        %476 = vmatpush1.msra.mxu0 0.0
        %477 = vmatprep.subr.mxu0 0.0
        %478 = vmatpush1.msra.mxu0 0.0
        %479 = vmatprep.subr.mxu0 0.0
        %480 = vmatpush1.msra.mxu0 0.0
        %481 = vmatprep.subr.mxu0 0.0
        %482 = vmatpush1.msra.mxu0 0.0
        %483 = vmatprep.subr.mxu0 0.0
        %484 = vmatpush1.msra.mxu0 0.0
        %485 = vmatprep.subr.mxu0 0.0
        %486 = vmatpush1.msra.mxu0 0.0
        %487 = vmatprep.subr.mxu0 0.0
        %488 = vmatpush1.msra.mxu0 0.0
        %489 = vmatprep.subr.mxu0 0.0
        %490 = vmatpush1.msra.mxu0 0.0
        %491 = vmatprep.subr.mxu0 0.0
        %492 = vmatpush1.msra.mxu0 0.0
        %493 = vmatprep.subr.mxu0 0.0
        %494 = vmatpush1.msra.mxu0 0.0
        %495 = vmatprep.subr.mxu0 0.0
        %496 = vmatpush1.msra.mxu0 0.0
        %497 = vmatprep.subr.mxu0 0.0
        %498 = vmatpush1.msra.mxu0 0.0
        %499 = vmatprep.subr.mxu0 0.0
        %500 = vmatpush1.msra.mxu0 0.0
        %501 = vmatprep.subr.mxu0 0.0
        %502 = vmatpush1.msra.mxu0 0.0
        %503 = vmatprep.subr.mxu0 0.0
        %504 = vmatpush1.msra.mxu0 0.0
        %505 = vmatprep.subr.mxu0 0.0
        %506 = vmatpush1.msra.mxu0 0.0
        %507 = vmatprep.subr.mxu0 0.0
        %508 = vmatpush1.msra.mxu0 0.0
        %509 = vmatprep.subr.mxu0 0.0
        %510 = vmatpush1.msra.mxu0 0.0
        %511 = vmatprep.subr.mxu0 0.0
        %512 = vmatpush1.msra.mxu0 0.0
        %513 = vmatprep.subr.mxu0 0.0
        %514 = vmatpush1.msra.mxu0 0.0
        %515 = vmatprep.subr.mxu0 0.0
        %516 = vmatpush1.msra.mxu0 0.0
        %517 = vmatprep.subr.mxu0 0.0
        %518 = vmatpush1.msra.mxu0 0.0
        %519 = vmatprep.subr.mxu0 0.0
        %520 = vmatpush1.msra.mxu0 0.0
        %521 = vmatprep.subr.mxu0 0.0
        %522 = vmatpush1.msra.mxu0 0.0
        %523 = vmatprep.mubr.f32.mxu0 0.0
        %524 = vmatmul.mubr.f32.gmra.mrb[0].mxu0 %v454
        %v525 = vpop.f32.mrb[0].mxu0
        %v526 = vadd.f32 0.0, %v525
        %v527 = vpop.f32.mrb[0].mxu0
        %528 = vdwg.mxu0
        %v529 = vadd.f32 %v448, %v526
        %s530 = scalar_lea.vmem %s2, 24
        %v531 = vld [vmem:[%s530] sm:$0xff]
        %532 = vrot.lane.b32.xlu0 %v292, 127
        %v533 = vpop.permute.xlu0 %532
        %v535 = vsel %vm299, %v531, 0
        %v537 = vsel %vm303, %v533, 0
        %539 = vmatprep.subr.mxu0 0.0
        %540 = vmatpush1.msra.mxu0 %v537
        %541 = vmatprep.subr.mxu0 0.0
        %542 = vmatpush1.msra.mxu0 0.0
        %543 = vmatprep.subr.mxu0 0.0
        %544 = vmatpush1.msra.mxu0 0.0
        %545 = vmatprep.subr.mxu0 0.0
        %546 = vmatpush1.msra.mxu0 0.0
        %547 = vmatprep.subr.mxu0 0.0
        %548 = vmatpush1.msra.mxu0 0.0
        %549 = vmatprep.subr.mxu0 0.0
        %550 = vmatpush1.msra.mxu0 0.0
        %551 = vmatprep.subr.mxu0 0.0
        %552 = vmatpush1.msra.mxu0 0.0
        %553 = vmatprep.subr.mxu0 0.0
        %554 = vmatpush1.msra.mxu0 0.0
        %555 = vmatprep.subr.mxu0 0.0
        %556 = vmatpush1.msra.mxu0 0.0
        %557 = vmatprep.subr.mxu0 0.0
        %558 = vmatpush1.msra.mxu0 0.0
        %559 = vmatprep.subr.mxu0 0.0
        %560 = vmatpush1.msra.mxu0 0.0
        %561 = vmatprep.subr.mxu0 0.0
        %562 = vmatpush1.msra.mxu0 0.0
        %563 = vmatprep.subr.mxu0 0.0
        %564 = vmatpush1.msra.mxu0 0.0
        %565 = vmatprep.subr.mxu0 0.0
        %566 = vmatpush1.msra.mxu0 0.0
        %567 = vmatprep.subr.mxu0 0.0
        %568 = vmatpush1.msra.mxu0 0.0
        %569 = vmatprep.subr.mxu0 0.0
        %570 = vmatpush1.msra.mxu0 0.0
        %571 = vmatprep.subr.mxu0 0.0
        %572 = vmatpush1.msra.mxu0 0.0
        %573 = vmatprep.subr.mxu0 0.0
        %574 = vmatpush1.msra.mxu0 0.0
        %575 = vmatprep.subr.mxu0 0.0
        %576 = vmatpush1.msra.mxu0 0.0
        %577 = vmatprep.subr.mxu0 0.0
        %578 = vmatpush1.msra.mxu0 0.0
        %579 = vmatprep.subr.mxu0 0.0
        %580 = vmatpush1.msra.mxu0 0.0
        %581 = vmatprep.subr.mxu0 0.0
        %582 = vmatpush1.msra.mxu0 0.0
        %583 = vmatprep.subr.mxu0 0.0
        %584 = vmatpush1.msra.mxu0 0.0
        %585 = vmatprep.subr.mxu0 0.0
        %586 = vmatpush1.msra.mxu0 0.0
        %587 = vmatprep.subr.mxu0 0.0
        %588 = vmatpush1.msra.mxu0 0.0
        %589 = vmatprep.subr.mxu0 0.0
        %590 = vmatpush1.msra.mxu0 0.0
        %591 = vmatprep.subr.mxu0 0.0
        %592 = vmatpush1.msra.mxu0 0.0
        %593 = vmatprep.subr.mxu0 0.0
        %594 = vmatpush1.msra.mxu0 0.0
        %595 = vmatprep.subr.mxu0 0.0
        %596 = vmatpush1.msra.mxu0 0.0
        %597 = vmatprep.subr.mxu0 0.0
        %598 = vmatpush1.msra.mxu0 0.0
        %599 = vmatprep.subr.mxu0 0.0
        %600 = vmatpush1.msra.mxu0 0.0
        %601 = vmatprep.subr.mxu0 0.0
        %602 = vmatpush1.msra.mxu0 0.0
        %603 = vmatprep.mubr.f32.mxu0 0.0
        %604 = vmatmul.mubr.f32.gmra.mrb[0].mxu0 %v535
        %v605 = vpop.f32.mrb[0].mxu0
        %v606 = vadd.f32 0.0, %v605
        %v607 = vpop.f32.mrb[0].mxu0
        %608 = vdwg.mxu0
        %v609 = vadd.f32 %v529, %v606
        %s610 = scalar_lea.vmem %s2, 32
        %v611 = vld [vmem:[%s610] sm:$0xff]
        %v612 = vcombine.high %v291, %v291
        %613 = vrot.lane.b32.xlu0 %v291, 111
        %v614 = vpop.permute.xlu0 %613
        %615 = vrot.lane.b32.xlu0 %v612, 111
        %v616 = vpop.permute.xlu0 %615
        %vm617 = vcmask 908288
        %v618 = vsel %vm617, %v614, %v616
        %v620 = vsel %vm299, %v611, 0
        %v622 = vsel %vm303, %v618, 0
        %624 = vmatprep.subr.mxu0 0.0
        %625 = vmatpush1.msra.mxu0 %v622
        %626 = vmatprep.subr.mxu0 0.0
        %627 = vmatpush1.msra.mxu0 0.0
        %628 = vmatprep.subr.mxu0 0.0
        %629 = vmatpush1.msra.mxu0 0.0
        %630 = vmatprep.subr.mxu0 0.0
        %631 = vmatpush1.msra.mxu0 0.0
        %632 = vmatprep.subr.mxu0 0.0
        %633 = vmatpush1.msra.mxu0 0.0
        %634 = vmatprep.subr.mxu0 0.0
        %635 = vmatpush1.msra.mxu0 0.0
        %636 = vmatprep.subr.mxu0 0.0
        %637 = vmatpush1.msra.mxu0 0.0
        %638 = vmatprep.subr.mxu0 0.0
        %639 = vmatpush1.msra.mxu0 0.0
        %640 = vmatprep.subr.mxu0 0.0
        %641 = vmatpush1.msra.mxu0 0.0
        %642 = vmatprep.subr.mxu0 0.0
        %643 = vmatpush1.msra.mxu0 0.0
        %644 = vmatprep.subr.mxu0 0.0
        %645 = vmatpush1.msra.mxu0 0.0
        %646 = vmatprep.subr.mxu0 0.0
        %647 = vmatpush1.msra.mxu0 0.0
        %648 = vmatprep.subr.mxu0 0.0
        %649 = vmatpush1.msra.mxu0 0.0
        %650 = vmatprep.subr.mxu0 0.0
        %651 = vmatpush1.msra.mxu0 0.0
        %652 = vmatprep.subr.mxu0 0.0
        %653 = vmatpush1.msra.mxu0 0.0
        %654 = vmatprep.subr.mxu0 0.0
        %655 = vmatpush1.msra.mxu0 0.0
        %656 = vmatprep.subr.mxu0 0.0
        %657 = vmatpush1.msra.mxu0 0.0
        %658 = vmatprep.subr.mxu0 0.0
        %659 = vmatpush1.msra.mxu0 0.0
        %660 = vmatprep.subr.mxu0 0.0
        %661 = vmatpush1.msra.mxu0 0.0
        %662 = vmatprep.subr.mxu0 0.0
        %663 = vmatpush1.msra.mxu0 0.0
        %664 = vmatprep.subr.mxu0 0.0
        %665 = vmatpush1.msra.mxu0 0.0
        %666 = vmatprep.subr.mxu0 0.0
        %667 = vmatpush1.msra.mxu0 0.0
        %668 = vmatprep.subr.mxu0 0.0
        %669 = vmatpush1.msra.mxu0 0.0
        %670 = vmatprep.subr.mxu0 0.0
        %671 = vmatpush1.msra.mxu0 0.0
        %672 = vmatprep.subr.mxu0 0.0
        %673 = vmatpush1.msra.mxu0 0.0
        %674 = vmatprep.subr.mxu0 0.0
        %675 = vmatpush1.msra.mxu0 0.0
        %676 = vmatprep.subr.mxu0 0.0
        %677 = vmatpush1.msra.mxu0 0.0
        %678 = vmatprep.subr.mxu0 0.0
        %679 = vmatpush1.msra.mxu0 0.0
        %680 = vmatprep.subr.mxu0 0.0
        %681 = vmatpush1.msra.mxu0 0.0
        %682 = vmatprep.subr.mxu0 0.0
        %683 = vmatpush1.msra.mxu0 0.0
        %684 = vmatprep.subr.mxu0 0.0
        %685 = vmatpush1.msra.mxu0 0.0
        %686 = vmatprep.subr.mxu0 0.0
        %687 = vmatpush1.msra.mxu0 0.0
        %688 = vmatprep.mubr.f32.mxu0 0.0
        %689 = vmatmul.mubr.f32.gmra.mrb[0].mxu0 %v620
        %v690 = vpop.f32.mrb[0].mxu0
        %v691 = vadd.f32 0.0, %v690
        %v692 = vpop.f32.mrb[0].mxu0
        %693 = vdwg.mxu0
        %v694 = vadd.f32 %v609, %v691
        %s695 = scalar_lea.vmem %s2, 40
        %v696 = vld [vmem:[%s695] sm:$0xff]
        %697 = vrot.lane.b32.xlu0 %v291, 110
        %v698 = vpop.permute.xlu0 %697
        %699 = vrot.lane.b32.xlu0 %v612, 110
        %v700 = vpop.permute.xlu0 %699
        %vm701 = vcmask 900096
        %v702 = vsel %vm701, %v698, %v700
        %v704 = vsel %vm299, %v696, 0
        %v706 = vsel %vm303, %v702, 0
        %708 = vmatprep.subr.mxu0 0.0
        %709 = vmatpush1.msra.mxu0 %v706
        %710 = vmatprep.subr.mxu0 0.0
        %711 = vmatpush1.msra.mxu0 0.0
        %712 = vmatprep.subr.mxu0 0.0
        %713 = vmatpush1.msra.mxu0 0.0
        %714 = vmatprep.subr.mxu0 0.0
        %715 = vmatpush1.msra.mxu0 0.0
        %716 = vmatprep.subr.mxu0 0.0
        %717 = vmatpush1.msra.mxu0 0.0
        %718 = vmatprep.subr.mxu0 0.0
        %719 = vmatpush1.msra.mxu0 0.0
        %720 = vmatprep.subr.mxu0 0.0
        %721 = vmatpush1.msra.mxu0 0.0
        %722 = vmatprep.subr.mxu0 0.0
        %723 = vmatpush1.msra.mxu0 0.0
        %724 = vmatprep.subr.mxu0 0.0
        %725 = vmatpush1.msra.mxu0 0.0
        %726 = vmatprep.subr.mxu0 0.0
        %727 = vmatpush1.msra.mxu0 0.0
        %728 = vmatprep.subr.mxu0 0.0
        %729 = vmatpush1.msra.mxu0 0.0
        %730 = vmatprep.subr.mxu0 0.0
        %731 = vmatpush1.msra.mxu0 0.0
        %732 = vmatprep.subr.mxu0 0.0
        %733 = vmatpush1.msra.mxu0 0.0
        %734 = vmatprep.subr.mxu0 0.0
        %735 = vmatpush1.msra.mxu0 0.0
        %736 = vmatprep.subr.mxu0 0.0
        %737 = vmatpush1.msra.mxu0 0.0
        %738 = vmatprep.subr.mxu0 0.0
        %739 = vmatpush1.msra.mxu0 0.0
        %740 = vmatprep.subr.mxu0 0.0
        %741 = vmatpush1.msra.mxu0 0.0
        %742 = vmatprep.subr.mxu0 0.0
        %743 = vmatpush1.msra.mxu0 0.0
        %744 = vmatprep.subr.mxu0 0.0
        %745 = vmatpush1.msra.mxu0 0.0
        %746 = vmatprep.subr.mxu0 0.0
        %747 = vmatpush1.msra.mxu0 0.0
        %748 = vmatprep.subr.mxu0 0.0
        %749 = vmatpush1.msra.mxu0 0.0
        %750 = vmatprep.subr.mxu0 0.0
        %751 = vmatpush1.msra.mxu0 0.0
        %752 = vmatprep.subr.mxu0 0.0
        %753 = vmatpush1.msra.mxu0 0.0
        %754 = vmatprep.subr.mxu0 0.0
        %755 = vmatpush1.msra.mxu0 0.0
        %756 = vmatprep.subr.mxu0 0.0
        %757 = vmatpush1.msra.mxu0 0.0
        %758 = vmatprep.subr.mxu0 0.0
        %759 = vmatpush1.msra.mxu0 0.0
        %760 = vmatprep.subr.mxu0 0.0
        %761 = vmatpush1.msra.mxu0 0.0
        %762 = vmatprep.subr.mxu0 0.0
        %763 = vmatpush1.msra.mxu0 0.0
        %764 = vmatprep.subr.mxu0 0.0
        %765 = vmatpush1.msra.mxu0 0.0
        %766 = vmatprep.subr.mxu0 0.0
        %767 = vmatpush1.msra.mxu0 0.0
        %768 = vmatprep.subr.mxu0 0.0
        %769 = vmatpush1.msra.mxu0 0.0
        %770 = vmatprep.subr.mxu0 0.0
        %771 = vmatpush1.msra.mxu0 0.0
        %772 = vmatprep.mubr.f32.mxu0 0.0
        %773 = vmatmul.mubr.f32.gmra.mrb[0].mxu0 %v704
        %v774 = vpop.f32.mrb[0].mxu0
        %v775 = vadd.f32 0.0, %v774
        %v776 = vpop.f32.mrb[0].mxu0
        %777 = vdwg.mxu0
        %v778 = vadd.f32 %v694, %v775
        %vm779 = vcmask 973824
        %780 = vst.msk [vmem:[%s260] sm:$0xff] %vm779, %v778
        %v781 = vld [vmem:[%s3] sm:$0x1]
        %v783 = vlaneseq
        %v784 = vshrl.u32 %v783, 7
        %v785 = vsub.s32 0, %v784
        %v786 = vrot.slane %v781, %v785
        %v788 = vmul.f32 %v778, %v786
        %v789 = vsel %vm779, %v788, 0.0
        %790 = vadd.xlane.f32.xlu0 %v789
        %v791 = vpop.xlane.xlu0 %790
        %vm792 = vcmask 7168
        %793 = vst.msk [vmem:[%s286] sm:$0xff] %vm792, %v791
        %v794 = vmul.f32 %v788, %v778
        %v795 = vsel %vm779, %v794, 0.0
        %796 = vadd.xlane.f32.xlu0 %v795
        %v797 = vpop.xlane.xlu0 %796
        %798 = vst.msk [vmem:[%s290] sm:$0xff] %vm792, %v797
        %s799 = sand.u32 %s123, 1
        %s800 = scalar_lea.sflag [#allocation3], %s799
        %s801 = sand.u32 %s123, 1
        %s802 = smul.addr %s801, 8
        %s803 = scalar_lea.vmem [#allocation2], %s802
        %p804 = scmp.lt.s32.totalorder %s21, 1
        %s805 = scalar_select %p804, %s21, 1
        %s806 = smul.addr %s805, 8
        %s807 = scalar_lea.vmem %s5, %s806
        %p808 = scmp.lt.s32.totalorder %s21, 1
        %s809 = scalar_select %p808, %s21, 1
        %s810 = smul.addr %s809, 8
        %s811 = scalar_lea.vmem %s6, %s810
        // Predicated region
        $region37: #{tpu_custom_call.1} parent=35 // pred_check
          %p812 = pneg %p133
        $region38: #{tpu_custom_call.1} parent=35 // pred_check_branch
          %814 = sbr.rel (%p812) target = $region40
        $region39: #{tpu_custom_call.1} parent=35 // pred_region
          %s816 = ssub.s32 128, 128
          %817 = vsyncadd %s800, %s816
          %s818 = smul.addr %s21, 128
          %s819 = scalar_lea.hbm %s4, %s818
          %s821 = sshll.u32 %s803, 4
          %s822 = int_to_ptr.vmem [resolvable:$true] %s821
          %824 = dma.vmem_to_hbm [thread:$0]  %s822, 128, %s819, %s800
        $region40: #{tpu_custom_call.1} parent=35 // pred_fallthru
          _
        // Predicated region
        $region41: #{tpu_custom_call.1} parent=35 // pred_check
          %p825 = pneg %p159
        $region42: #{tpu_custom_call.1} parent=35 // pred_check_branch
          %827 = sbr.rel (%p825) target = $region44
        $region43: #{tpu_custom_call.1} parent=35 // pred_region
          _
        $region44: #{tpu_custom_call.1} parent=35 // pred_fallthru
          _
        // Predicated region
        $region45: #{tpu_custom_call.1} parent=35 // pred_check
          %p828 = pneg %p185
        $region46: #{tpu_custom_call.1} parent=35 // pred_check_branch
          %830 = sbr.rel (%p828) target = $region48
        $region47: #{tpu_custom_call.1} parent=35 // pred_region
          _
        $region48: #{tpu_custom_call.1} parent=35 // pred_fallthru
          _
      $region36: #{tpu_custom_call.1} parent=5 // pred_fallthru
        _
      %p831 = scmp.le.s32.totalorder 2, %s16
      // Predicated region
      $region49: #{tpu_custom_call.1} parent=5 // pred_check
        %p832 = pneg %p831
      $region50: #{tpu_custom_call.1} parent=5 // pred_check_branch
        %834 = sbr.rel (%p832) target = $region52
      $region51: #{tpu_custom_call.1} parent=5 // pred_region
        %s835 = ssub.s32 %s16, 2
        // Predicated region
        $region53: #{tpu_custom_call.1} parent=51 // pred_check
          %p836 = pneg %p139
        $region54: #{tpu_custom_call.1} parent=51 // pred_check_branch
          %838 = sbr.rel (%p836) target = $region56
        $region55: #{tpu_custom_call.1} parent=51 // pred_region
          %s839 = sand.u32 %s124, 1
          %s840 = scalar_lea.sflag [#allocation3], %s839
          %s841 = sand.u32 %s124, 1
          %s842 = smul.addr %s841, 8
          %s843 = scalar_lea.vmem [#allocation2], %s842
          %844 = dma.done %s840, 128
        $region56: #{tpu_custom_call.1} parent=51 // pred_fallthru
          _
        // Predicated region
        $region57: #{tpu_custom_call.1} parent=51 // pred_check
          %p845 = pneg %p165
        $region58: #{tpu_custom_call.1} parent=51 // pred_check_branch
          %847 = sbr.rel (%p845) target = $region60
        $region59: #{tpu_custom_call.1} parent=51 // pred_region
          %p848 = scmp.lt.s32.totalorder %s22, 1
          %s849 = scalar_select %p848, %s22, 1
          %s850 = smul.addr %s849, 8
          %s851 = scalar_lea.vmem %s5, %s850
        $region60: #{tpu_custom_call.1} parent=51 // pred_fallthru
          _
        // Predicated region
        $region61: #{tpu_custom_call.1} parent=51 // pred_check
          %p852 = pneg %p191
        $region62: #{tpu_custom_call.1} parent=51 // pred_check_branch
          %854 = sbr.rel (%p852) target = $region64
        $region63: #{tpu_custom_call.1} parent=51 // pred_region
          %p855 = scmp.lt.s32.totalorder %s22, 1
          %s856 = scalar_select %p855, %s22, 1
          %s857 = smul.addr %s856, 8
          %s858 = scalar_lea.vmem %s6, %s857
        $region64: #{tpu_custom_call.1} parent=51 // pred_fallthru
          _
      $region52: #{tpu_custom_call.1} parent=5 // pred_fallthru
        _
    $region6: #{tpu_custom_call.1} parent=1 // loop_footer
      %s20 = sadd.s32 1, %s16
    $region7: #{tpu_custom_call.1} parent=1 // loop_footer_branch
      %15 = sbr.rel target = $region3
    $region8: #{tpu_custom_call.1} parent=1 // loop_exit
      _
    %859 = vsyncpa [#allocation3], 1
    %s860 = scalar_lea.sflag [#allocation3], 1
    %861 = vsyncpa %s860, 1

</llo_original>
